<compile_context>
chip_gen: v6e
topology: v6e:2x2x1
jax: 0.10.0
libtpu: 0.0.40
codegen_flags: <defaults>
</compile_context>

<pallas_src>
import functools

import jax
import jax.numpy as jnp
from jax.experimental import pallas as pl
from jax.experimental.pallas import tpu as pltpu


def out_size(l_in, kernel_size, padding, dilation=1, stride=1):
    a = l_in + 2 * padding - dilation * (kernel_size - 1) - 1
    b = int(a / stride)
    return b + 1


def _round_up(x, m):
    return ((x + m - 1) // m) * m


# ---------------------------------------------------------------------------
# Fused per-chunk kernel: conv (as matmul) -> masked pool+relu -> MLP head ->
# masked BCE partial-loss.  Weights are resident; x/y stream with the grid.
# ---------------------------------------------------------------------------
def _xmlcnn_fused_kernel(x_ref, wc_ref, bc_ref, w1_ref, b1_ref, w2_ref, b2_ref,
                         y_ref, loss_ref, *, seg_sizes, chunk, true_b, true_y):
    fin = sum(seg_sizes)

    # 1) All conv branches in one MXU matmul; columns already in torch's flatten
    #    order (branch-major, then f*L + l).  Shape (chunk, fin), lane-dense.
    z = jnp.dot(x_ref[...], wc_ref[...], preferred_element_type=jnp.float32) + bc_ref[...]

    # 2) MaxPool1d(kernel=3, stride=1, padding=1) + ReLU over the flattened axis,
    #    fused across branches: a single boundary mask keeps windows from crossing
    #    branch boundaries (within a branch the window crosses filter boundaries,
    #    exactly like the reference).  Two XLU rolls total, no slices / concat.
    lane = jax.lax.broadcasted_iota(jnp.int32, z.shape, 1)
    starts, ends, off = [], [], 0
    for seg in seg_sizes:                     # static Python unroll over branches
        starts.append(off)
        ends.append(off + seg - 1)
        off += seg
    start_mask = functools.reduce(jnp.logical_or, [lane == s for s in starts])
    end_mask = functools.reduce(jnp.logical_or, [lane == e for e in ends])
    left = jnp.where(start_mask, -jnp.inf, pltpu.roll(z, shift=1, axis=1))
    right = jnp.where(end_mask, -jnp.inf, pltpu.roll(z, shift=fin - 1, axis=1))
    feat = jnp.maximum(jnp.maximum(jnp.maximum(left, z), right), 0.0)

    # 3) MLP head: relu(feat @ W1 + b1) @ W2 + b2  (H and Y zero-padded to 128-lane).
    h = jnp.maximum(
        jnp.dot(feat, w1_ref[...], preferred_element_type=jnp.float32) + b1_ref[...], 0.0)
    logits = jnp.dot(h, w2_ref[...], preferred_element_type=jnp.float32) + b2_ref[...]

    # 4) BCE-with-logits partial sum for this chunk.  Padded batch rows and padded
    #    label lanes are masked out; the wrapper divides by the TRUE batch size.
    #    (log(1+exp(-|z|)) kept instead of log1p: guaranteed Mosaic lowering; diff is ULPs.)
    t = y_ref[...]
    per = jnp.maximum(logits, 0.0) - logits * t + jnp.log(1.0 + jnp.exp(-jnp.abs(logits)))
    row = pl.program_id(0) * chunk + jax.lax.broadcasted_iota(jnp.int32, per.shape, 0)
    col = jax.lax.broadcasted_iota(jnp.int32, per.shape, 1)
    per = jnp.where((row < true_b) & (col < true_y), per, 0.0)
    loss_ref[...] = jnp.sum(per, axis=0)[None, None, :]   # lane-dense (1, 1, Y_pad) block


def build_forward(meta):
    """Returns a jitted forward(prep, e_emb, batch_y) -> scalar loss."""
    seg_sizes = tuple(meta["seg_sizes"])
    y_true = meta["y_dim"]
    y_pad = meta["y_pad"]
    chunk = meta["chunk_b"]

    @jax.jit
    def forward(prep, e_emb, batch_y):
        B, S, C = e_emb.shape
        SC = S * C
        fin = sum(seg_sizes)
        Hp = prep["fin_w"].shape[1]
        Bp = _round_up(B, chunk)
        num_chunks = Bp // chunk

        x_flat = e_emb.reshape(B, SC)                              # metadata-only reshape
        x_flat = jnp.pad(x_flat, ((0, Bp - B), (0, 0)))            # sublane-fill padding
        y_p = jnp.pad(batch_y, ((0, Bp - B), (0, y_pad - y_true))) # row + lane padding

        kernel = functools.partial(_xmlcnn_fused_kernel, seg_sizes=seg_sizes,
                                   chunk=chunk, true_b=B, true_y=y_true)

        flops = 2 * Bp * (SC * fin + fin * Hp + Hp * y_pad)
        bytes_acc = 4 * (x_flat.size + y_p.size + prep["conv_w_big"].size
                         + prep["conv_b_big"].size + prep["fin_w"].size
                         + prep["fin_b"].size + prep["out_w"].size + prep["out_b"].size
                         + num_chunks * y_pad)

        partial_losses = pl.pallas_call(
            kernel,
            out_shape=jax.ShapeDtypeStruct((num_chunks, 1, y_pad), jnp.float32),
            grid=(num_chunks,),
            in_specs=[
                pl.BlockSpec((chunk, SC), lambda i: (i, 0)),                  # x streams
                pl.BlockSpec(prep["conv_w_big"].shape, lambda i: (0, 0)),     # resident
                pl.BlockSpec(prep["conv_b_big"].shape, lambda i: (0, 0)),     # resident
                pl.BlockSpec(prep["fin_w"].shape, lambda i: (0, 0)),          # resident
                pl.BlockSpec(prep["fin_b"].shape, lambda i: (0, 0)),          # resident
                pl.BlockSpec(prep["out_w"].shape, lambda i: (0, 0)),          # resident
                pl.BlockSpec(prep["out_b"].shape, lambda i: (0, 0)),          # resident
                pl.BlockSpec((chunk, y_pad), lambda i: (i, 0)),               # y streams
            ],
            out_specs=pl.BlockSpec((1, 1, y_pad), lambda i: (i, 0, 0)),
            compiler_params=pltpu.CompilerParams(
                dimension_semantics=("parallel",)),
            cost_estimate=pl.CostEstimate(flops=int(flops),
                                          transcendentals=int(Bp * y_pad),
                                          bytes_accessed=int(bytes_acc)),
        )(x_flat, prep["conv_w_big"], prep["conv_b_big"],
          prep["fin_w"], prep["fin_b"], prep["out_w"], prep["out_b"], y_p)

        return jnp.sum(partial_losses) / B          # true batch size, per the spec

    return forward


# ---------------------------------------------------------------------------
# One-time parameter preprocessing:
#   * fold each stride-2 Conv1d into a dense (S*C, F*L) matrix whose columns follow
#     torch's flatten order (f*L + l),
#   * zero-pad hidden_dims / y_dim to lane-dense 128 multiples (exact, see header).
# ---------------------------------------------------------------------------
def prepare_params(params, cfg, chunk_b=8):
    S = cfg["sequence_length"]
    stride = 2
    w_blocks, b_blocks, seg_sizes = [], [], []
    for i, fsz in enumerate(cfg["filter_sizes"]):
        pad = int(fsz / 2 - 1)
        L = out_size(S, fsz, pad, stride=stride)
        w = params["conv_w"][i]                                   # (F, C, fsz) torch layout
        F, C, _ = w.shape
        s_idx = jnp.arange(S)[:, None, None]
        l_idx = jnp.arange(L)[None, :, None]
        k_idx = jnp.arange(fsz)[None, None, :]
        # taps[s, l, k] = 1 iff input position s is tap k of output position l
        # (positions outside [0, S) never match -> implicit zero padding).
        taps = (s_idx == stride * l_idx + k_idx - pad).astype(w.dtype)     # (S, L, fsz)
        w_big = jnp.einsum("slk,fck->scfl", taps, w).reshape(S * C, F * L)
        w_blocks.append(w_big)
        b_blocks.append(jnp.repeat(params["conv_b"][i], L))               # (F*L,)
        seg_sizes.append(F * L)

    H = cfg["hidden_dims"]
    Y = cfg["y_dim"]
    Hp = _round_up(H, 128)
    Yp = _round_up(Y, 128)
    fin_w = jnp.pad(params["fin_w"], ((0, 0), (0, Hp - H)))       # (fin, Hp)
    fin_b = jnp.pad(params["fin_b"], ((0, 0), (0, Hp - H)))       # (1, Hp)
    out_w = jnp.pad(params["out_w"], ((0, Hp - H), (0, Yp - Y)))  # (Hp, Yp)
    out_b = jnp.pad(params["out_b"], ((0, 0), (0, Yp - Y)))       # (1, Yp)

    prep = dict(
        conv_w_big=jnp.concatenate(w_blocks, axis=1),      # (S*C, fin)
        conv_b_big=jnp.concatenate(b_blocks)[None, :],     # (1, fin)
        fin_w=fin_w, fin_b=fin_b, out_w=out_w, out_b=out_b,
    )
    meta = dict(seg_sizes=tuple(seg_sizes), y_dim=Y, y_pad=Yp, chunk_b=chunk_b)
    return prep, meta


# ---------------------------------------------------------------------------
# Deterministic parameter init (xavier-uniform like the PyTorch module)
# ---------------------------------------------------------------------------
def _xavier_uniform(key, shape, fan_in, fan_out):
    bound = (6.0 / (fan_in + fan_out)) ** 0.5
    return jax.random.uniform(key, shape, jnp.float32, -bound, bound)


def init_params(key, cfg):
    C = cfg["embedding_dim"]
    F = cfg["num_filters"]
    H = cfg["hidden_dims"]
    Y = cfg["y_dim"]
    S = cfg["sequence_length"]
    conv_w, conv_b = [], []
    fin = 0
    for fsz in cfg["filter_sizes"]:
        key, k1, k2 = jax.random.split(key, 3)
        conv_w.append(_xavier_uniform(k1, (F, C, fsz), C * fsz, F * fsz))
        bnd = 1.0 / (C * fsz) ** 0.5
        conv_b.append(jax.random.uniform(k2, (F,), jnp.float32, -bnd, bnd))
        pad = int(fsz / 2 - 1)
        fin += out_size(S, fsz, pad, stride=2) * F
    key, k1, k2, k3, k4 = jax.random.split(key, 5)
    fin_w = _xavier_uniform(k1, (fin, H), fin, H)
    fin_b = jax.random.uniform(k2, (1, H), jnp.float32, -1.0 / fin ** 0.5, 1.0 / fin ** 0.5)
    out_w = _xavier_uniform(k3, (H, Y), H, Y)
    out_b = jax.random.uniform(k4, (1, Y), jnp.float32, -1.0 / H ** 0.5, 1.0 / H ** 0.5)
    return dict(conv_w=conv_w, conv_b=conv_b, fin_w=fin_w, fin_b=fin_b,
                out_w=out_w, out_b=out_b)


# ---------------------------------------------------------------------------
# Pure-JAX reference (independent path via lax.conv) used only for validation.
# ---------------------------------------------------------------------------
def xmlcnn_reference(params, e_emb, batch_y, cfg):
    B, S, C = e_emb.shape
    x = jnp.transpose(e_emb, (0, 2, 1))                            # (B, C, S)
    feats = []
    for i, fsz in enumerate(cfg["filter_sizes"]):
        pad = int(fsz / 2 - 1)
        o = jax.lax.conv_general_dilated(
            x, params["conv_w"][i], window_strides=(2,), padding=[(pad, pad)],
            dimension_numbers=("NCH", "OIH", "NCH"))
        o = o + params["conv_b"][i][None, :, None]                 # (B, F, L)
        z = o.reshape(B, -1)                                       # torch flatten order
        neg = jnp.full((B, 1), -jnp.inf, z.dtype)
        zp = jnp.concatenate([neg, z, neg], axis=1)
        m = jnp.maximum(jnp.maximum(zp[:, :-2], zp[:, 1:-1]), zp[:, 2:])
        feats.append(jnp.maximum(m, 0.0))
    feat = jnp.concatenate(feats, axis=1) if len(feats) > 1 else feats[0]
    h = jnp.maximum(feat @ params["fin_w"] + params["fin_b"], 0.0)
    logits = h @ params["out_w"] + params["out_b"]
    per = (jnp.maximum(logits, 0.0) - logits * batch_y
           + jnp.log1p(jnp.exp(-jnp.abs(logits))))
    return jnp.sum(per) / B


if __name__ == "__main__":
    cfg = dict(
        sequence_length=16,
        embedding_dim=16,
        num_filters=16,
        filter_sizes=[2, 4],   # per-branch l_out = 8 -> branch feature = 128, fin = 256
        hidden_dims=64,
        y_dim=32,
    )

    key = jax.random.PRNGKey(0)
    kp, kx, ky, kx2, ky2 = jax.random.split(key, 5)
    params = init_params(kp, cfg)
    prep, meta = prepare_params(params, cfg, chunk_b=8)
    forward = build_forward(meta)

    # Small-batch run (B=4 -> padded to 8, single grid step).
    B = 4
    e_emb = jax.random.normal(kx, (B, cfg["sequence_length"], cfg["embedding_dim"]), jnp.float32)
    batch_y = jax.random.bernoulli(ky, 0.5, (B, cfg["y_dim"])).astype(jnp.float32)
    loss = forward(prep, e_emb, batch_y)
    jax.block_until_ready(loss)

    ref = xmlcnn_reference(params, e_emb, batch_y, cfg)
    assert bool(jnp.isfinite(loss)), "kernel produced non-finite loss"
    rel = abs(float(loss) - float(ref)) / max(1.0, abs(float(ref)))
    assert rel < 1e-3, f"kernel/reference mismatch: {float(loss)} vs {float(ref)}"

    # Multi-chunk run (B=20 -> padded to 24, grid=(3,)): exercises resident weights
    # + streamed activations + per-chunk partial losses.
    B2 = 20
    e_emb2 = jax.random.normal(kx2, (B2, cfg["sequence_length"], cfg["embedding_dim"]), jnp.float32)
    batch_y2 = jax.random.bernoulli(ky2, 0.5, (B2, cfg["y_dim"])).astype(jnp.float32)
    loss2 = forward(prep, e_emb2, batch_y2)
    jax.block_until_ready(loss2)
    ref2 = xmlcnn_reference(params, e_emb2, batch_y2, cfg)
    rel2 = abs(float(loss2) - float(ref2)) / max(1.0, abs(float(ref2)))
    assert rel2 < 1e-3, f"kernel/reference mismatch (multi-chunk): {float(loss2)} vs {float(ref2)}"

    print("KERNEL_OK")
</pallas_src>

<mosaic_0001>
module attributes {stable_mosaic.version = 11 : i64} {
  func.func @_xmlcnn_fused_kernel(%arg0: i32, %arg1: memref<8x256xf32, #tpu.memory_space<vmem>>, %arg2: memref<256x256xf32, #tpu.memory_space<vmem>>, %arg3: memref<1x256xf32, #tpu.memory_space<vmem>>, %arg4: memref<256x128xf32, #tpu.memory_space<vmem>>, %arg5: memref<1x128xf32, #tpu.memory_space<vmem>>, %arg6: memref<128x128xf32, #tpu.memory_space<vmem>>, %arg7: memref<1x128xf32, #tpu.memory_space<vmem>>, %arg8: memref<8x128xf32, #tpu.memory_space<vmem>>, %arg9: memref<1x1x128xf32, #tpu.memory_space<vmem>>) attributes {dimension_semantics = [#tpu.dimension_semantics<parallel>], iteration_bounds = array<i64: 1>, scalar_prefetch = 0 : i64, scratch_operands = 0 : i64, tpu.core_type = #tpu.core_type<tc>, window_params = [{transform_indices = @transform_0, window_bounds = array<i64: 8, 256>}, {pipeline_mode = #tpu.pipeline_mode<synchronous>, transform_indices = @transform_1, window_bounds = array<i64: 256, 256>}, {pipeline_mode = #tpu.pipeline_mode<synchronous>, transform_indices = @transform_2, window_bounds = array<i64: 1, 256>}, {pipeline_mode = #tpu.pipeline_mode<synchronous>, transform_indices = @transform_3, window_bounds = array<i64: 256, 128>}, {pipeline_mode = #tpu.pipeline_mode<synchronous>, transform_indices = @transform_4, window_bounds = array<i64: 1, 128>}, {pipeline_mode = #tpu.pipeline_mode<synchronous>, transform_indices = @transform_5, window_bounds = array<i64: 128, 128>}, {pipeline_mode = #tpu.pipeline_mode<synchronous>, transform_indices = @transform_6, window_bounds = array<i64: 1, 128>}, {transform_indices = @transform_7, window_bounds = array<i64: 8, 128>}, {transform_indices = @transform_8, window_bounds = array<i64: 1, 1, 128>}]} {
    %c0 = arith.constant 0 : index
    %c0_0 = arith.constant 0 : index
    %0 = vector.load %arg1[%c0, %c0_0] : memref<8x256xf32, #tpu.memory_space<vmem>>, vector<8x256xf32>
    %c0_1 = arith.constant 0 : index
    %c0_2 = arith.constant 0 : index
    %1 = vector.load %arg2[%c0_1, %c0_2] : memref<256x256xf32, #tpu.memory_space<vmem>>, vector<256x256xf32>
    %cst = arith.constant dense<0.000000e+00> : vector<8x256xf32>
    %2 = tpu.matmul %0, %1, %cst {dimension_numbers = #tpu.dot_dimension_numbers<[1], [0], [0], [1], [0, 0, 1, 1], [], []>} : vector<8x256xf32>, vector<256x256xf32>, vector<8x256xf32> -> vector<8x256xf32>
    %c0_3 = arith.constant 0 : index
    %c0_4 = arith.constant 0 : index
    %3 = vector.load %arg3[%c0_3, %c0_4] : memref<1x256xf32, #tpu.memory_space<vmem>>, vector<1x256xf32>
    %4 = vector.broadcast %3 : vector<1x256xf32> to vector<8x256xf32>
    %5 = arith.addf %2, %4 : vector<8x256xf32>
    %6 = tpu.iota {dimensions = array<i32: 1>} : vector<8x256xi32>
    %c0_i32 = arith.constant 0 : i32
    %7 = vector.broadcast %c0_i32 : i32 to vector<8x256xi32>
    %8 = arith.cmpi eq, %6, %7 : vector<8x256xi32>
    %c128_i32 = arith.constant 128 : i32
    %9 = vector.broadcast %c128_i32 : i32 to vector<8x256xi32>
    %10 = arith.cmpi eq, %6, %9 : vector<8x256xi32>
    %11 = arith.ori %8, %10 : vector<8x256xi1>
    %c127_i32 = arith.constant 127 : i32
    %12 = vector.broadcast %c127_i32 : i32 to vector<8x256xi32>
    %13 = arith.cmpi eq, %6, %12 : vector<8x256xi32>
    %c255_i32 = arith.constant 255 : i32
    %14 = vector.broadcast %c255_i32 : i32 to vector<8x256xi32>
    %15 = arith.cmpi eq, %6, %14 : vector<8x256xi32>
    %16 = arith.ori %13, %15 : vector<8x256xi1>
    %c1_i32 = arith.constant 1 : i32
    %17 = tpu.dynamic_rotate %5 by %c1_i32 dim 1 : vector<8x256xf32>, i32 -> vector<8x256xf32>
    %cst_5 = arith.constant 0xFF800000 : f32
    %18 = vector.broadcast %cst_5 : f32 to vector<8x256xf32>
    %19 = arith.select %11, %18, %17 : vector<8x256xi1>, vector<8x256xf32>
    %c255_i32_6 = arith.constant 255 : i32
    %20 = tpu.dynamic_rotate %5 by %c255_i32_6 dim 1 : vector<8x256xf32>, i32 -> vector<8x256xf32>
    %cst_7 = arith.constant 0xFF800000 : f32
    %21 = vector.broadcast %cst_7 : f32 to vector<8x256xf32>
    %22 = arith.select %16, %21, %20 : vector<8x256xi1>, vector<8x256xf32>
    %23 = arith.maximumf %19, %5 : vector<8x256xf32>
    %24 = arith.maximumf %23, %22 : vector<8x256xf32>
    %cst_8 = arith.constant 0.000000e+00 : f32
    %25 = vector.broadcast %cst_8 : f32 to vector<8x256xf32>
    %26 = arith.maximumf %24, %25 : vector<8x256xf32>
    %c0_9 = arith.constant 0 : index
    %c0_10 = arith.constant 0 : index
    %27 = vector.load %arg4[%c0_9, %c0_10] : memref<256x128xf32, #tpu.memory_space<vmem>>, vector<256x128xf32>
    %cst_11 = arith.constant dense<0.000000e+00> : vector<8x128xf32>
    %28 = tpu.matmul %26, %27, %cst_11 {dimension_numbers = #tpu.dot_dimension_numbers<[1], [0], [0], [1], [0, 0, 1, 1], [], []>} : vector<8x256xf32>, vector<256x128xf32>, vector<8x128xf32> -> vector<8x128xf32>
    %c0_12 = arith.constant 0 : index
    %c0_13 = arith.constant 0 : index
    %29 = vector.load %arg5[%c0_12, %c0_13] : memref<1x128xf32, #tpu.memory_space<vmem>>, vector<1x128xf32>
    %30 = vector.broadcast %29 : vector<1x128xf32> to vector<8x128xf32>
    %31 = arith.addf %28, %30 : vector<8x128xf32>
    %cst_14 = arith.constant 0.000000e+00 : f32
    %32 = vector.broadcast %cst_14 : f32 to vector<8x128xf32>
    %33 = arith.maximumf %31, %32 : vector<8x128xf32>
    %c0_15 = arith.constant 0 : index
    %c0_16 = arith.constant 0 : index
    %34 = vector.load %arg6[%c0_15, %c0_16] : memref<128x128xf32, #tpu.memory_space<vmem>>, vector<128x128xf32>
    %cst_17 = arith.constant dense<0.000000e+00> : vector<8x128xf32>
    %35 = tpu.matmul %33, %34, %cst_17 {dimension_numbers = #tpu.dot_dimension_numbers<[1], [0], [0], [1], [0, 0, 1, 1], [], []>} : vector<8x128xf32>, vector<128x128xf32>, vector<8x128xf32> -> vector<8x128xf32>
    %c0_18 = arith.constant 0 : index
    %c0_19 = arith.constant 0 : index
    %36 = vector.load %arg7[%c0_18, %c0_19] : memref<1x128xf32, #tpu.memory_space<vmem>>, vector<1x128xf32>
    %37 = vector.broadcast %36 : vector<1x128xf32> to vector<8x128xf32>
    %38 = arith.addf %35, %37 : vector<8x128xf32>
    %c0_20 = arith.constant 0 : index
    %c0_21 = arith.constant 0 : index
    %39 = vector.load %arg8[%c0_20, %c0_21] : memref<8x128xf32, #tpu.memory_space<vmem>>, vector<8x128xf32>
    %cst_22 = arith.constant 0.000000e+00 : f32
    %40 = vector.broadcast %cst_22 : f32 to vector<8x128xf32>
    %41 = arith.maximumf %38, %40 : vector<8x128xf32>
    %42 = arith.mulf %38, %39 : vector<8x128xf32>
    %43 = arith.subf %41, %42 : vector<8x128xf32>
    %44 = math.absf %38 : vector<8x128xf32>
    %cst_23 = arith.constant 0.000000e+00 : f32
    %45 = vector.broadcast %cst_23 : f32 to vector<8x128xf32>
    %46 = arith.subf %45, %44 : vector<8x128xf32>
    %47 = math.exp %46 : vector<8x128xf32>
    %cst_24 = arith.constant 1.000000e+00 : f32
    %48 = vector.broadcast %cst_24 : f32 to vector<8x128xf32>
    %49 = arith.addf %48, %47 : vector<8x128xf32>
    %50 = math.log %49 : vector<8x128xf32>
    %51 = arith.addf %43, %50 : vector<8x128xf32>
    %c8_i32 = arith.constant 8 : i32
    %52 = arith.muli %arg0, %c8_i32 : i32
    %53 = tpu.iota {dimensions = array<i32: 0>} : vector<8x128xi32>
    %54 = vector.broadcast %52 : i32 to vector<8x128xi32>
    %55 = arith.addi %54, %53 : vector<8x128xi32>
    %56 = tpu.iota {dimensions = array<i32: 1>} : vector<8x128xi32>
    %c4_i32 = arith.constant 4 : i32
    %57 = vector.broadcast %c4_i32 : i32 to vector<8x128xi32>
    %58 = arith.cmpi slt, %55, %57 : vector<8x128xi32>
    %c32_i32 = arith.constant 32 : i32
    %59 = vector.broadcast %c32_i32 : i32 to vector<8x128xi32>
    %60 = arith.cmpi slt, %56, %59 : vector<8x128xi32>
    %61 = arith.andi %58, %60 : vector<8x128xi1>
    %cst_25 = arith.constant 0.000000e+00 : f32
    %62 = vector.broadcast %cst_25 : f32 to vector<8x128xf32>
    %63 = arith.select %61, %51, %62 : vector<8x128xi1>, vector<8x128xf32>
    %cst_26 = arith.constant dense<0.000000e+00> : vector<128xf32>
    %64 = vector.multi_reduction <add>, %63, %cst_26 [0] : vector<8x128xf32> to vector<128xf32>
    %65 = vector.shape_cast %64 : vector<128xf32> to vector<1x1x128xf32>
    %c0_27 = arith.constant 0 : index
    %c0_28 = arith.constant 0 : index
    %c0_29 = arith.constant 0 : index
    %66 = vector.load %arg9[%c0_27, %c0_28, %c0_29] : memref<1x1x128xf32, #tpu.memory_space<vmem>>, vector<1x1x128xf32>
    tpu.vector_store %arg9[%c0_27, %c0_28, %c0_29], %65 {strides = array<i32>} : memref<1x1x128xf32, #tpu.memory_space<vmem>>, vector<1x1x128xf32>,
    return
  }
  func.func @transform_0(%arg0: i32) -> (i32, i32) {
    %c0_i32 = arith.constant 0 : i32
    %c0_i32_0 = arith.constant 0 : i32
    return %arg0, %c0_i32 : i32, i32
  }
  func.func @transform_1(%arg0: i32) -> (i32, i32) {
    %c0_i32 = arith.constant 0 : i32
    %c0_i32_0 = arith.constant 0 : i32
    %c0_i32_1 = arith.constant 0 : i32
    return %c0_i32, %c0_i32_0 : i32, i32
  }
  func.func @transform_2(%arg0: i32) -> (i32, i32) {
    %c0_i32 = arith.constant 0 : i32
    %c0_i32_0 = arith.constant 0 : i32
    %c0_i32_1 = arith.constant 0 : i32
    return %c0_i32, %c0_i32_0 : i32, i32
  }
  func.func @transform_3(%arg0: i32) -> (i32, i32) {
    %c0_i32 = arith.constant 0 : i32
    %c0_i32_0 = arith.constant 0 : i32
    %c0_i32_1 = arith.constant 0 : i32
    return %c0_i32, %c0_i32_0 : i32, i32
  }
  func.func @transform_4(%arg0: i32) -> (i32, i32) {
    %c0_i32 = arith.constant 0 : i32
    %c0_i32_0 = arith.constant 0 : i32
    %c0_i32_1 = arith.constant 0 : i32
    return %c0_i32, %c0_i32_0 : i32, i32
  }
  func.func @transform_5(%arg0: i32) -> (i32, i32) {
    %c0_i32 = arith.constant 0 : i32
    %c0_i32_0 = arith.constant 0 : i32
    %c0_i32_1 = arith.constant 0 : i32
    return %c0_i32, %c0_i32_0 : i32, i32
  }
  func.func @transform_6(%arg0: i32) -> (i32, i32) {
    %c0_i32 = arith.constant 0 : i32
    %c0_i32_0 = arith.constant 0 : i32
    %c0_i32_1 = arith.constant 0 : i32
    return %c0_i32, %c0_i32_0 : i32, i32
  }
  func.func @transform_7(%arg0: i32) -> (i32, i32) {
    %c0_i32 = arith.constant 0 : i32
    %c0_i32_0 = arith.constant 0 : i32
    return %arg0, %c0_i32 : i32, i32
  }
  func.func @transform_8(%arg0: i32) -> (i32, i32, i32) {
    %c0_i32 = arith.constant 0 : i32
    %c0_i32_0 = arith.constant 0 : i32
    %c0_i32_1 = arith.constant 0 : i32
    return %arg0, %c0_i32, %c0_i32_0 : i32, i32, i32
  }
}

</mosaic_0001>

<llo_original>
// kernel: forward.1
$region0: #{forward.1}
  #allocation0 [shape = 'u32[]', space=smem, size = 0x4, offset = 0x4, fixed_abs, tag = 'smem constant byte address 0x4 - core index']
  #allocation1 [shape = 'u32[144,128]{1,0:T(1,128)}', space=vmem, size = 0x12000, scoped, tag = 'internal scratch']
  %s0 = inlined_call_operand.vmem [shape: f32[8,256], index: 0, kind: input, shape index: {}]
  %s1 = inlined_call_operand.hbm [shape: f32[256,256], index: 1, kind: input, shape index: {}]
  %s2 = inlined_call_operand.vmem [shape: f32[1,256], index: 2, kind: input, shape index: {}]
  %s3 = inlined_call_operand.hbm [shape: f32[256,128], index: 3, kind: input, shape index: {}]
  %s4 = inlined_call_operand.vmem [shape: f32[1,128], index: 4, kind: input, shape index: {}]
  %s5 = inlined_call_operand.hbm [shape: f32[128,128], index: 5, kind: input, shape index: {}]
  %s6 = inlined_call_operand.vmem [shape: f32[1,128], index: 6, kind: input, shape index: {}]
  %s7 = inlined_call_operand.vmem [shape: f32[8,128], index: 7, kind: input, shape index: {}]
  %s8 = inlined_call_operand.vmem [shape: f32[1,1,128], index: 8, kind: output, shape index: {}]
  %s9 = sld [smem:[#allocation0]]
  $region54: #{forward.1} parent=0
    _
  %s11 = ssub.s32 1, %s9
  %s12 = scalar_select 0, %s11, %s9
  $region1: #{forward.1} parent=0
    #allocation2 [shape = 'u8[262144]{0}', space=vmem, size = 0x40000, scoped, tag = 'input window, operand 1, single buffered']
    #allocation3 [shape = 's32[1]{0}', space=sflag, size = 0x4, scoped, tag = 'scoped memory for forward.1']
    #allocation4 [shape = 'u8[131072]{0}', space=vmem, size = 0x20000, scoped, tag = 'input window, operand 3, single buffered']
    #allocation5 [shape = 's32[1]{0}', space=sflag, size = 0x4, scoped, tag = 'scoped memory for forward.1']
    #allocation6 [shape = 'u8[65536]{0}', space=vmem, size = 0x10000, scoped, tag = 'input window, operand 5, single buffered']
    %13 = vsyncpa [#allocation3], 0
    %14 = vsyncpa [#allocation5], 0
    // Predicated region
    $region2: #{forward.1} parent=1 // pred_check
      _
    $region3: #{forward.1} parent=1 // pred_check_branch
      %16 = sbr.rel (0) target = $region5
    $region4: #{forward.1} parent=1 // pred_region
      _
    $region5: #{forward.1} parent=1 // pred_fallthru
      _
    // Predicated region
    $region6: #{forward.1} parent=1 // pred_check
      _
    $region7: #{forward.1} parent=1 // pred_check_branch
      %18 = sbr.rel (0) target = $region9
    $region8: #{forward.1} parent=1 // pred_region
      %s20 = ssub.s32 8192, 8192
      %21 = vsyncadd [#allocation3], %s20
      %s22 = sshll.u32 [#allocation2], 4
      %s23 = int_to_ptr.vmem [resolvable:$true] %s22
      %28 = dma.hbm_to_vmem [thread:$0]  %s1, 8192, %s23, [#allocation3], 256, 256, 16
    $region9: #{forward.1} parent=1 // pred_fallthru
      _
    // Predicated region
    $region10: #{forward.1} parent=1 // pred_check
      _
    $region11: #{forward.1} parent=1 // pred_check_branch
      %30 = sbr.rel (0) target = $region13
    $region12: #{forward.1} parent=1 // pred_region
      _
    $region13: #{forward.1} parent=1 // pred_fallthru
      _
    // Predicated region
    $region14: #{forward.1} parent=1 // pred_check
      _
    $region15: #{forward.1} parent=1 // pred_check_branch
      %32 = sbr.rel (0) target = $region17
    $region16: #{forward.1} parent=1 // pred_region
      %s34 = ssub.s32 4096, 4096
      %35 = vsyncadd [#allocation5], %s34
      %s36 = sshll.u32 [#allocation4], 4
      %s37 = int_to_ptr.vmem [resolvable:$true] %s36
      %42 = dma.hbm_to_vmem [thread:$0]  %s3, 4096, %s37, [#allocation5], 128, 128, 8
    $region17: #{forward.1} parent=1 // pred_fallthru
      _
    // Predicated region
    $region18: #{forward.1} parent=1 // pred_check
      _
    $region19: #{forward.1} parent=1 // pred_check_branch
      %44 = sbr.rel (0) target = $region21
    $region20: #{forward.1} parent=1 // pred_region
      _
    $region21: #{forward.1} parent=1 // pred_fallthru
      _
    // Predicated region
    $region22: #{forward.1} parent=1 // pred_check
      _
    $region23: #{forward.1} parent=1 // pred_check_branch
      %46 = sbr.rel (0) target = $region25
    $region24: #{forward.1} parent=1 // pred_region
      %s48 = ssub.s32 2048, 2048
      %49 = vsyncadd [#allocation5], %s48
      %s50 = sshll.u32 [#allocation6], 4
      %s51 = int_to_ptr.vmem [resolvable:$true] %s50
      %56 = dma.hbm_to_vmem [thread:$0]  %s5, 2048, %s51, [#allocation5], 128, 128, 8
    $region25: #{forward.1} parent=1 // pred_fallthru
      _
    // Predicated region
    $region26: #{forward.1} parent=1 // pred_check
      _
    $region27: #{forward.1} parent=1 // pred_check_branch
      %58 = sbr.rel (0) target = $region29
    $region28: #{forward.1} parent=1 // pred_region
      _
    $region29: #{forward.1} parent=1 // pred_fallthru
      _
    // Predicated region
    $region30: #{forward.1} parent=1 // pred_check
      _
    $region31: #{forward.1} parent=1 // pred_check_branch
      %60 = sbr.rel (0) target = $region33
    $region32: #{forward.1} parent=1 // pred_region
      _
    $region33: #{forward.1} parent=1 // pred_fallthru
      _
    // Predicated region
    $region34: #{forward.1} parent=1 // pred_check
      _
    $region35: #{forward.1} parent=1 // pred_check_branch
      %62 = sbr.rel (0) target = $region37
    $region36: #{forward.1} parent=1 // pred_region
      %63 = dma.done [#allocation3], 8192
    $region37: #{forward.1} parent=1 // pred_fallthru
      _
    // Predicated region
    $region38: #{forward.1} parent=1 // pred_check
      _
    $region39: #{forward.1} parent=1 // pred_check_branch
      %65 = sbr.rel (0) target = $region41
    $region40: #{forward.1} parent=1 // pred_region
      %66 = dma.done [#allocation5], 4096
    $region41: #{forward.1} parent=1 // pred_fallthru
      _
    // Predicated region
    $region42: #{forward.1} parent=1 // pred_check
      _
    $region43: #{forward.1} parent=1 // pred_check_branch
      %68 = sbr.rel (0) target = $region45
    $region44: #{forward.1} parent=1 // pred_region
      %69 = dma.done [#allocation5], 2048
    $region45: #{forward.1} parent=1 // pred_fallthru
      _
    %v70 = vld [vmem:[%s0] sm:$0xff]
    %v71 = vld [vmem:[%s0 + $0x8] sm:$0xff]
    %v72 = vld [vmem:[#allocation2] sm:$0xff]
    %v73 = vld [vmem:[#allocation2 + $0x8] sm:$0xff]
    %v74 = vld [vmem:[#allocation2 + $0x10] sm:$0xff]
    %v75 = vld [vmem:[#allocation2 + $0x18] sm:$0xff]
    %v76 = vld [vmem:[#allocation2 + $0x20] sm:$0xff]
    %v77 = vld [vmem:[#allocation2 + $0x28] sm:$0xff]
    %v78 = vld [vmem:[#allocation2 + $0x30] sm:$0xff]
    %v79 = vld [vmem:[#allocation2 + $0x38] sm:$0xff]
    %v80 = vld [vmem:[#allocation2 + $0x40] sm:$0xff]
    %v81 = vld [vmem:[#allocation2 + $0x48] sm:$0xff]
    %v82 = vld [vmem:[#allocation2 + $0x50] sm:$0xff]
    %v83 = vld [vmem:[#allocation2 + $0x58] sm:$0xff]
    %v84 = vld [vmem:[#allocation2 + $0x60] sm:$0xff]
    %v85 = vld [vmem:[#allocation2 + $0x68] sm:$0xff]
    %v86 = vld [vmem:[#allocation2 + $0x70] sm:$0xff]
    %v87 = vld [vmem:[#allocation2 + $0x78] sm:$0xff]
    %v88 = vld [vmem:[#allocation2 + $0x80] sm:$0xff]
    %v89 = vld [vmem:[#allocation2 + $0x88] sm:$0xff]
    %v90 = vld [vmem:[#allocation2 + $0x90] sm:$0xff]
    %v91 = vld [vmem:[#allocation2 + $0x98] sm:$0xff]
    %v92 = vld [vmem:[#allocation2 + $0xa0] sm:$0xff]
    %v93 = vld [vmem:[#allocation2 + $0xa8] sm:$0xff]
    %v94 = vld [vmem:[#allocation2 + $0xb0] sm:$0xff]
    %v95 = vld [vmem:[#allocation2 + $0xb8] sm:$0xff]
    %v96 = vld [vmem:[#allocation2 + $0xc0] sm:$0xff]
    %v97 = vld [vmem:[#allocation2 + $0xc8] sm:$0xff]
    %v98 = vld [vmem:[#allocation2 + $0xd0] sm:$0xff]
    %v99 = vld [vmem:[#allocation2 + $0xd8] sm:$0xff]
    %v100 = vld [vmem:[#allocation2 + $0xe0] sm:$0xff]
    %v101 = vld [vmem:[#allocation2 + $0xe8] sm:$0xff]
    %v102 = vld [vmem:[#allocation2 + $0xf0] sm:$0xff]
    %v103 = vld [vmem:[#allocation2 + $0xf8] sm:$0xff]
    %v104 = vld [vmem:[#allocation2 + $0x100] sm:$0xff]
    %v105 = vld [vmem:[#allocation2 + $0x108] sm:$0xff]
    %v106 = vld [vmem:[#allocation2 + $0x110] sm:$0xff]
    %v107 = vld [vmem:[#allocation2 + $0x118] sm:$0xff]
    %v108 = vld [vmem:[#allocation2 + $0x120] sm:$0xff]
    %v109 = vld [vmem:[#allocation2 + $0x128] sm:$0xff]
    %v110 = vld [vmem:[#allocation2 + $0x130] sm:$0xff]
    %v111 = vld [vmem:[#allocation2 + $0x138] sm:$0xff]
    %v112 = vld [vmem:[#allocation2 + $0x140] sm:$0xff]
    %v113 = vld [vmem:[#allocation2 + $0x148] sm:$0xff]
    %v114 = vld [vmem:[#allocation2 + $0x150] sm:$0xff]
    %v115 = vld [vmem:[#allocation2 + $0x158] sm:$0xff]
    %v116 = vld [vmem:[#allocation2 + $0x160] sm:$0xff]
    %v117 = vld [vmem:[#allocation2 + $0x168] sm:$0xff]
    %v118 = vld [vmem:[#allocation2 + $0x170] sm:$0xff]
    %v119 = vld [vmem:[#allocation2 + $0x178] sm:$0xff]
    %v120 = vld [vmem:[#allocation2 + $0x180] sm:$0xff]
    %v121 = vld [vmem:[#allocation2 + $0x188] sm:$0xff]
    %v122 = vld [vmem:[#allocation2 + $0x190] sm:$0xff]
    %v123 = vld [vmem:[#allocation2 + $0x198] sm:$0xff]
    %v124 = vld [vmem:[#allocation2 + $0x1a0] sm:$0xff]
    %v125 = vld [vmem:[#allocation2 + $0x1a8] sm:$0xff]
    %v126 = vld [vmem:[#allocation2 + $0x1b0] sm:$0xff]
    %v127 = vld [vmem:[#allocation2 + $0x1b8] sm:$0xff]
    %v128 = vld [vmem:[#allocation2 + $0x1c0] sm:$0xff]
    %v129 = vld [vmem:[#allocation2 + $0x1c8] sm:$0xff]
    %v130 = vld [vmem:[#allocation2 + $0x1d0] sm:$0xff]
    %v131 = vld [vmem:[#allocation2 + $0x1d8] sm:$0xff]
    %v132 = vld [vmem:[#allocation2 + $0x1e0] sm:$0xff]
    %v133 = vld [vmem:[#allocation2 + $0x1e8] sm:$0xff]
    %v134 = vld [vmem:[#allocation2 + $0x1f0] sm:$0xff]
    %v135 = vld [vmem:[#allocation2 + $0x1f8] sm:$0xff]
    %v136 = vld [vmem:[%s2] sm:$0x3]
    %v138 = vlaneseq
    %v139 = vshrl.u32 %v138, 7
    %v140 = vsub.s32 0, %v139
    %v141 = vrot.slane %v136, %v140
    %v142 = vlaneseq
    %v143 = vshrl.u32 %v142, 7
    %v144 = vsub.s32 1, %v143
    %v145 = vrot.slane %v136, %v144
    %148 = vmatprep.subr.mxu0 %v103
    %149 = vmatpush1.msra.mxu0 %v102
    %150 = vmatprep.subr.mxu0 %v101
    %151 = vmatpush1.msra.mxu0 %v100
    %152 = vmatprep.subr.mxu0 %v99
    %153 = vmatpush1.msra.mxu0 %v98
    %154 = vmatprep.subr.mxu0 %v97
    %155 = vmatpush1.msra.mxu0 %v96
    %156 = vmatprep.subr.mxu0 %v95
    %157 = vmatpush1.msra.mxu0 %v94
    %158 = vmatprep.subr.mxu0 %v93
    %159 = vmatpush1.msra.mxu0 %v92
    %160 = vmatprep.subr.mxu0 %v91
    %161 = vmatpush1.msra.mxu0 %v90
    %162 = vmatprep.subr.mxu0 %v89
    %163 = vmatpush1.msra.mxu0 %v88
    %164 = vmatprep.subr.mxu0 %v87
    %165 = vmatpush1.msra.mxu0 %v86
    %166 = vmatprep.subr.mxu0 %v85
    %167 = vmatpush1.msra.mxu0 %v84
    %168 = vmatprep.subr.mxu0 %v83
    %169 = vmatpush1.msra.mxu0 %v82
    %170 = vmatprep.subr.mxu0 %v81
    %171 = vmatpush1.msra.mxu0 %v80
    %172 = vmatprep.subr.mxu0 %v79
    %173 = vmatpush1.msra.mxu0 %v78
    %174 = vmatprep.subr.mxu0 %v77
    %175 = vmatpush1.msra.mxu0 %v76
    %176 = vmatprep.subr.mxu0 %v75
    %177 = vmatpush1.msra.mxu0 %v74
    %178 = vmatprep.subr.mxu0 %v73
    %179 = vmatpush1.msra.mxu0 %v72
    %180 = vmatprep.subr.mxu0 %v135
    %181 = vmatpush2.msra.mxu0 %v134
    %182 = vmatprep.subr.mxu0 %v133
    %183 = vmatpush2.msra.mxu0 %v132
    %184 = vmatprep.subr.mxu0 %v131
    %185 = vmatpush2.msra.mxu0 %v130
    %186 = vmatprep.subr.mxu0 %v129
    %187 = vmatpush2.msra.mxu0 %v128
    %188 = vmatprep.subr.mxu0 %v127
    %189 = vmatpush2.msra.mxu0 %v126
    %190 = vmatprep.subr.mxu0 %v125
    %191 = vmatpush2.msra.mxu0 %v124
    %192 = vmatprep.subr.mxu0 %v123
    %193 = vmatpush2.msra.mxu0 %v122
    %194 = vmatprep.subr.mxu0 %v121
    %195 = vmatpush2.msra.mxu0 %v120
    %196 = vmatprep.subr.mxu0 %v119
    %197 = vmatpush2.msra.mxu0 %v118
    %198 = vmatprep.subr.mxu0 %v117
    %199 = vmatpush2.msra.mxu0 %v116
    %200 = vmatprep.subr.mxu0 %v115
    %201 = vmatpush2.msra.mxu0 %v114
    %202 = vmatprep.subr.mxu0 %v113
    %203 = vmatpush2.msra.mxu0 %v112
    %204 = vmatprep.subr.mxu0 %v111
    %205 = vmatpush2.msra.mxu0 %v110
    %206 = vmatprep.subr.mxu0 %v109
    %207 = vmatpush2.msra.mxu0 %v108
    %208 = vmatprep.subr.mxu0 %v107
    %209 = vmatpush2.msra.mxu0 %v106
    %210 = vmatprep.subr.mxu0 %v105
    %211 = vmatpush2.msra.mxu0 %v104
    %212 = vmatprep.mubr.f32.mxu0 %v71
    %213 = vmatmul.mubr.f32.gmra.mxu0 %v70
    %v214 = vpop.f32.mrf.mxu0
    %v215 = vadd.f32 %v141, %v214
    %v216 = vpop.f32.mrf.mxu0
    %v217 = vadd.f32 %v145, %v216
    %218 = vdwg.mxu0
    %v219 = vlaneseq
    %v220 = vand.u32 %v219, 127
    %v221 = vadd.s32 %v220, 128
    %vm222 = vcmp.eq.s32.totalorder %v220, 0
    %vm223 = vcmp.eq.s32.totalorder %v221, 0
    %vm224 = vcmp.eq.s32.totalorder %v220, 128
    %vm225 = vcmp.eq.s32.totalorder %v221, 128
    %vm226 = vmor %vm222, %vm224
    %vm227 = vmor %vm223, %vm225
    %vm228 = vcmp.eq.s32.totalorder %v220, 127
    %vm229 = vcmp.eq.s32.totalorder %v221, 127
    %vm230 = vcmp.eq.s32.totalorder %v220, 255
    %vm231 = vcmp.eq.s32.totalorder %v221, 255
    %vm232 = vmor %vm228, %vm230
    %vm233 = vmor %vm229, %vm231
    %234 = vrot.lane.b32.xlu0 %v215, 1
    %v235 = vpop.permute.xlu0 %234
    %236 = vrot.lane.b32.xlu0 %v217, 1
    %v237 = vpop.permute.xlu0 %236
    %vm238 = vcmp.lt.s32.totalorder %v220, 1
    %v239 = vsel %vm238, %v235, %v237
    %v240 = vsel %vm238, %v237, %v235
    %v241 = vsel %vm226, -inf, %v240
    %v242 = vsel %vm227, -inf, %v239
    %243 = vrot.lane.b32.xlu0 %v215, 127
    %v244 = vpop.permute.xlu0 %243
    %245 = vrot.lane.b32.xlu0 %v217, 127
    %v246 = vpop.permute.xlu0 %245
    %vm247 = vcmp.lt.s32.totalorder %v220, 127
    %v248 = vsel %vm247, %v244, %v246
    %v249 = vsel %vm247, %v246, %v244
    %v250 = vsel %vm232, -inf, %v248
    %v251 = vsel %vm233, -inf, %v249
    %v252 = vmax.f32 %v241, %v215
    %v253 = vmax.f32 %v242, %v217
    %v254 = vmax.f32 %v252, %v250
    %v255 = vmax.f32 %v253, %v251
    %v256 = vmax.f32 %v254, 0.0
    %v257 = vmax.f32 %v255, 0.0
    %v258 = vld [vmem:[#allocation4] sm:$0xff]
    %v259 = vld [vmem:[#allocation4 + $0x8] sm:$0xff]
    %v260 = vld [vmem:[#allocation4 + $0x10] sm:$0xff]
    %v261 = vld [vmem:[#allocation4 + $0x18] sm:$0xff]
    %v262 = vld [vmem:[#allocation4 + $0x20] sm:$0xff]
    %v263 = vld [vmem:[#allocation4 + $0x28] sm:$0xff]
    %v264 = vld [vmem:[#allocation4 + $0x30] sm:$0xff]
    %v265 = vld [vmem:[#allocation4 + $0x38] sm:$0xff]
    %v266 = vld [vmem:[#allocation4 + $0x40] sm:$0xff]
    %v267 = vld [vmem:[#allocation4 + $0x48] sm:$0xff]
    %v268 = vld [vmem:[#allocation4 + $0x50] sm:$0xff]
    %v269 = vld [vmem:[#allocation4 + $0x58] sm:$0xff]
    %v270 = vld [vmem:[#allocation4 + $0x60] sm:$0xff]
    %v271 = vld [vmem:[#allocation4 + $0x68] sm:$0xff]
    %v272 = vld [vmem:[#allocation4 + $0x70] sm:$0xff]
    %v273 = vld [vmem:[#allocation4 + $0x78] sm:$0xff]
    %v274 = vld [vmem:[#allocation4 + $0x80] sm:$0xff]
    %v275 = vld [vmem:[#allocation4 + $0x88] sm:$0xff]
    %v276 = vld [vmem:[#allocation4 + $0x90] sm:$0xff]
    %v277 = vld [vmem:[#allocation4 + $0x98] sm:$0xff]
    %v278 = vld [vmem:[#allocation4 + $0xa0] sm:$0xff]
    %v279 = vld [vmem:[#allocation4 + $0xa8] sm:$0xff]
    %v280 = vld [vmem:[#allocation4 + $0xb0] sm:$0xff]
    %v281 = vld [vmem:[#allocation4 + $0xb8] sm:$0xff]
    %v282 = vld [vmem:[#allocation4 + $0xc0] sm:$0xff]
    %v283 = vld [vmem:[#allocation4 + $0xc8] sm:$0xff]
    %v284 = vld [vmem:[#allocation4 + $0xd0] sm:$0xff]
    %v285 = vld [vmem:[#allocation4 + $0xd8] sm:$0xff]
    %v286 = vld [vmem:[#allocation4 + $0xe0] sm:$0xff]
    %v287 = vld [vmem:[#allocation4 + $0xe8] sm:$0xff]
    %v288 = vld [vmem:[#allocation4 + $0xf0] sm:$0xff]
    %v289 = vld [vmem:[#allocation4 + $0xf8] sm:$0xff]
    %v290 = vld [vmem:[%s4] sm:$0x1]
    %v292 = vlaneseq
    %v293 = vshrl.u32 %v292, 7
    %v294 = vsub.s32 0, %v293
    %v295 = vrot.slane %v290, %v294
    %297 = vmatprep.subr.mxu0 0.0
    %298 = vmatpush1.msra.mxu0 %v273
    %299 = vmatprep.subr.mxu0 0.0
    %300 = vmatpush1.msra.mxu0 %v272
    %301 = vmatprep.subr.mxu0 0.0
    %302 = vmatpush1.msra.mxu0 %v271
    %303 = vmatprep.subr.mxu0 0.0
    %304 = vmatpush1.msra.mxu0 %v270
    %305 = vmatprep.subr.mxu0 0.0
    %306 = vmatpush1.msra.mxu0 %v269
    %307 = vmatprep.subr.mxu0 0.0
    %308 = vmatpush1.msra.mxu0 %v268
    %309 = vmatprep.subr.mxu0 0.0
    %310 = vmatpush1.msra.mxu0 %v267
    %311 = vmatprep.subr.mxu0 0.0
    %312 = vmatpush1.msra.mxu0 %v266
    %313 = vmatprep.subr.mxu0 0.0
    %314 = vmatpush1.msra.mxu0 %v265
    %315 = vmatprep.subr.mxu0 0.0
    %316 = vmatpush1.msra.mxu0 %v264
    %317 = vmatprep.subr.mxu0 0.0
    %318 = vmatpush1.msra.mxu0 %v263
    %319 = vmatprep.subr.mxu0 0.0
    %320 = vmatpush1.msra.mxu0 %v262
    %321 = vmatprep.subr.mxu0 0.0
    %322 = vmatpush1.msra.mxu0 %v261
    %323 = vmatprep.subr.mxu0 0.0
    %324 = vmatpush1.msra.mxu0 %v260
    %325 = vmatprep.subr.mxu0 0.0
    %326 = vmatpush1.msra.mxu0 %v259
    %327 = vmatprep.subr.mxu0 0.0
    %328 = vmatpush1.msra.mxu0 %v258
    %329 = vmatprep.subr.mxu0 0.0
    %330 = vmatpush2.msra.mxu0 %v289
    %331 = vmatprep.subr.mxu0 0.0
    %332 = vmatpush2.msra.mxu0 %v288
    %333 = vmatprep.subr.mxu0 0.0
    %334 = vmatpush2.msra.mxu0 %v287
    %335 = vmatprep.subr.mxu0 0.0
    %336 = vmatpush2.msra.mxu0 %v286
    %337 = vmatprep.subr.mxu0 0.0
    %338 = vmatpush2.msra.mxu0 %v285
    %339 = vmatprep.subr.mxu0 0.0
    %340 = vmatpush2.msra.mxu0 %v284
    %341 = vmatprep.subr.mxu0 0.0
    %342 = vmatpush2.msra.mxu0 %v283
    %343 = vmatprep.subr.mxu0 0.0
    %344 = vmatpush2.msra.mxu0 %v282
    %345 = vmatprep.subr.mxu0 0.0
    %346 = vmatpush2.msra.mxu0 %v281
    %347 = vmatprep.subr.mxu0 0.0
    %348 = vmatpush2.msra.mxu0 %v280
    %349 = vmatprep.subr.mxu0 0.0
    %350 = vmatpush2.msra.mxu0 %v279
    %351 = vmatprep.subr.mxu0 0.0
    %352 = vmatpush2.msra.mxu0 %v278
    %353 = vmatprep.subr.mxu0 0.0
    %354 = vmatpush2.msra.mxu0 %v277
    %355 = vmatprep.subr.mxu0 0.0
    %356 = vmatpush2.msra.mxu0 %v276
    %357 = vmatprep.subr.mxu0 0.0
    %358 = vmatpush2.msra.mxu0 %v275
    %359 = vmatprep.subr.mxu0 0.0
    %360 = vmatpush2.msra.mxu0 %v274
    %361 = vmatprep.mubr.f32.mxu0 %v257
    %362 = vmatmul.mubr.f32.gmra.mxu0 %v256
    %v363 = vpop.f32.mrf.mxu0
    %v364 = vadd.f32 %v295, %v363
    %v365 = vpop.f32.mrf.mxu0
    %366 = vdwg.mxu0
    %v367 = vmax.f32 %v364, 0.0
    %v368 = vld [vmem:[#allocation6] sm:$0xff]
    %v369 = vld [vmem:[#allocation6 + $0x8] sm:$0xff]
    %v370 = vld [vmem:[#allocation6 + $0x10] sm:$0xff]
    %v371 = vld [vmem:[#allocation6 + $0x18] sm:$0xff]
    %v372 = vld [vmem:[#allocation6 + $0x20] sm:$0xff]
    %v373 = vld [vmem:[#allocation6 + $0x28] sm:$0xff]
    %v374 = vld [vmem:[#allocation6 + $0x30] sm:$0xff]
    %v375 = vld [vmem:[#allocation6 + $0x38] sm:$0xff]
    %v376 = vld [vmem:[#allocation6 + $0x40] sm:$0xff]
    %v377 = vld [vmem:[#allocation6 + $0x48] sm:$0xff]
    %v378 = vld [vmem:[#allocation6 + $0x50] sm:$0xff]
    %v379 = vld [vmem:[#allocation6 + $0x58] sm:$0xff]
    %v380 = vld [vmem:[#allocation6 + $0x60] sm:$0xff]
    %v381 = vld [vmem:[#allocation6 + $0x68] sm:$0xff]
    %v382 = vld [vmem:[#allocation6 + $0x70] sm:$0xff]
    %v383 = vld [vmem:[#allocation6 + $0x78] sm:$0xff]
    %v384 = vld [vmem:[%s6] sm:$0x1]
    %v386 = vlaneseq
    %v387 = vshrl.u32 %v386, 7
    %v388 = vsub.s32 0, %v387
    %v389 = vrot.slane %v384, %v388
    %391 = vmatprep.subr.mxu0 0.0
    %392 = vmatpush1.msra.mxu0 %v383
    %393 = vmatprep.subr.mxu0 0.0
    %394 = vmatpush1.msra.mxu0 %v382
    %395 = vmatprep.subr.mxu0 0.0
    %396 = vmatpush1.msra.mxu0 %v381
    %397 = vmatprep.subr.mxu0 0.0
    %398 = vmatpush1.msra.mxu0 %v380
    %399 = vmatprep.subr.mxu0 0.0
    %400 = vmatpush1.msra.mxu0 %v379
    %401 = vmatprep.subr.mxu0 0.0
    %402 = vmatpush1.msra.mxu0 %v378
    %403 = vmatprep.subr.mxu0 0.0
    %404 = vmatpush1.msra.mxu0 %v377
    %405 = vmatprep.subr.mxu0 0.0
    %406 = vmatpush1.msra.mxu0 %v376
    %407 = vmatprep.subr.mxu0 0.0
    %408 = vmatpush1.msra.mxu0 %v375
    %409 = vmatprep.subr.mxu0 0.0
    %410 = vmatpush1.msra.mxu0 %v374
    %411 = vmatprep.subr.mxu0 0.0
    %412 = vmatpush1.msra.mxu0 %v373
    %413 = vmatprep.subr.mxu0 0.0
    %414 = vmatpush1.msra.mxu0 %v372
    %415 = vmatprep.subr.mxu0 0.0
    %416 = vmatpush1.msra.mxu0 %v371
    %417 = vmatprep.subr.mxu0 0.0
    %418 = vmatpush1.msra.mxu0 %v370
    %419 = vmatprep.subr.mxu0 0.0
    %420 = vmatpush1.msra.mxu0 %v369
    %421 = vmatprep.subr.mxu0 0.0
    %422 = vmatpush1.msra.mxu0 %v368
    %423 = vmatprep.subr.mxu0 0.0
    %424 = vmatpush2.msra.mxu0 0.0
    %425 = vmatprep.subr.mxu0 0.0
    %426 = vmatpush2.msra.mxu0 0.0
    %427 = vmatprep.subr.mxu0 0.0
    %428 = vmatpush2.msra.mxu0 0.0
    %429 = vmatprep.subr.mxu0 0.0
    %430 = vmatpush2.msra.mxu0 0.0
    %431 = vmatprep.subr.mxu0 0.0
    %432 = vmatpush2.msra.mxu0 0.0
    %433 = vmatprep.subr.mxu0 0.0
    %434 = vmatpush2.msra.mxu0 0.0
    %435 = vmatprep.subr.mxu0 0.0
    %436 = vmatpush2.msra.mxu0 0.0
    %437 = vmatprep.subr.mxu0 0.0
    %438 = vmatpush2.msra.mxu0 0.0
    %439 = vmatprep.subr.mxu0 0.0
    %440 = vmatpush2.msra.mxu0 0.0
    %441 = vmatprep.subr.mxu0 0.0
    %442 = vmatpush2.msra.mxu0 0.0
    %443 = vmatprep.subr.mxu0 0.0
    %444 = vmatpush2.msra.mxu0 0.0
    %445 = vmatprep.subr.mxu0 0.0
    %446 = vmatpush2.msra.mxu0 0.0
    %447 = vmatprep.subr.mxu0 0.0
    %448 = vmatpush2.msra.mxu0 0.0
    %449 = vmatprep.subr.mxu0 0.0
    %450 = vmatpush2.msra.mxu0 0.0
    %451 = vmatprep.subr.mxu0 0.0
    %452 = vmatpush2.msra.mxu0 0.0
    %453 = vmatprep.subr.mxu0 0.0
    %454 = vmatpush2.msra.mxu0 0.0
    %455 = vmatprep.mubr.f32.mxu0 0.0
    %456 = vmatmul.mubr.f32.gmra.mxu0 %v367
    %v457 = vpop.f32.mrf.mxu0
    %v458 = vadd.f32 %v389, %v457
    %v459 = vpop.f32.mrf.mxu0
    %460 = vdwg.mxu0
    %v461 = vld [vmem:[%s7] sm:$0xff]
    %v462 = vmax.f32 %v458, 0.0
    %v463 = vmul.f32 %v458, %v461
    %v464 = vsub.f32 %v462, %v463
    %v465 = vand.u32 2147483647, %v458
    %v466 = vsub.f32 0.0, %v465
    %v467 = vmul.f32 %v466, 1.442695
    %v468 = vpow.pop %v467
    %v469 = vadd.f32 %v468, 1.0
    %v470 = vlog2.pop %v469
    %v471 = vmul.f32 %v470, 0.6931472
    %v472 = vadd.f32 %v464, %v471
    %s473 = smul.u32 0, 8
    %v474 = vlaneseq
    %v475 = vshrl.u32 %v474, 7
    %v476 = vstv %s473
    %v477 = vadd.s32 %v476, %v475
    %vm478 = vcmp.lt.s32.totalorder %v477, 4
    %vm479 = vcmp.lt.s32.totalorder %v220, 32
    %vm480 = vmand %vm478, %vm479
    %v481 = vsel %vm480, %v472, 0.0
    %v482 = vrot.slane %v481, 4
    %v483 = vadd.f32 %v481, %v482
    %v484 = vrot.slane %v483, 2
    %v485 = vadd.f32 %v483, %v484
    %v486 = vrot.slane %v485, 1
    %v487 = vadd.f32 %v485, %v486
    %488 = vst [vmem:[%s8] sm:$0x1] %v487
    // Predicated region
    $region46: #{forward.1} parent=1 // pred_check
      _
    $region47: #{forward.1} parent=1 // pred_check_branch
      %490 = sbr.rel (0) target = $region49
    $region48: #{forward.1} parent=1 // pred_region
      _
    $region49: #{forward.1} parent=1 // pred_fallthru
      _
    // Predicated region
    $region50: #{forward.1} parent=1 // pred_check
      _
    $region51: #{forward.1} parent=1 // pred_check_branch
      %492 = sbr.rel (0) target = $region53
    $region52: #{forward.1} parent=1 // pred_region
      _
    $region53: #{forward.1} parent=1 // pred_fallthru
      _
    %493 = vsyncpa [#allocation3], 1
    %494 = vsyncpa [#allocation5], 1

</llo_original>
